<compile_context>
chip_gen: v7x
topology: tpu7x:2x2x1
jax: 0.10.0
libtpu: 0.0.40
codegen_flags: <defaults>
</compile_context>

<pallas_src>
import jax
import jax.numpy as jnp
from jax.experimental import pallas as pl
from jax.experimental.pallas import tpu as pltpu


def _make_dice_partial_kernel(*, hw, t_hw, chunk, n_full, has_tail,
                              tiles_per_split, gate_full):
    n_chunks = t_hw // chunk

    def kernel(x_ref, t_ref, inter_ref, denom_ref, inter_acc, denom_acc):
        k = pl.program_id(2)                      # HW tile within this split
        kg = pl.program_id(0) * tiles_per_split + k   # global HW tile index

        @pl.when(k == 0)
        def _init():
            inter_acc[...] = jnp.zeros_like(inter_acc)
            denom_acc[...] = jnp.zeros_like(denom_acc)

        def accumulate(masked):
            pi = None
            pd = None
            # Lane-aligned slices (multiples of 128): the fold is pure VPU work,
            # no cross-lane ops; only one small VMEM RMW per step below.
            for j in range(n_chunks):
                lo = j * chunk
                xs = x_ref[:, lo:lo + chunk].astype(jnp.float32)
                ts = t_ref[:, lo:lo + chunk].astype(jnp.float32)
                # sigmoid(x) == 0.5*tanh(0.5*x)+0.5 : single EUP op + cheap VPU.
                ps = 0.5 * jnp.tanh(0.5 * xs) + 0.5
                if masked:
                    lane = jax.lax.broadcasted_iota(jnp.int32, ps.shape, 1)
                    valid = (kg * t_hw + lo + lane) < hw
                    ps = jnp.where(valid, ps, 0.0)
                    ts = jnp.where(valid, ts, 0.0)
                ci = ps * ts          # intersect contribution
                cd = ps + ts          # denominator contribution
                pi = ci if pi is None else pi + ci
                pd = cd if pd is None else pd + cd
            inter_acc[...] += pi
            denom_acc[...] += pd

        if gate_full:
            # Hot path: fully-valid tiles run unmasked.
            @pl.when(kg < n_full)
            def _full():
                accumulate(masked=False)

            if has_tail:
                # Only the single partial tile pays for the mask.
                @pl.when(kg == n_full)
                def _tail():
                    accumulate(masked=True)
            # Tiles with kg > n_full (split overshoot) contribute exactly zero.
        else:
            accumulate(masked=False)

        @pl.when(k == tiles_per_split - 1)
        def _finalize():
            # One cross-lane reduce per (split, row-tile) — outside the hot loop.
            inter_ref[...] = jnp.sum(inter_acc[...], axis=-1, keepdims=True)[None]
            denom_ref[...] = jnp.sum(denom_acc[...], axis=-1, keepdims=True)[None]

    return kernel


def dice_loss(input_nc, target_nc, *, epsilon=1e-05, target_lanes=32768,
              vmem_budget_bytes=None):
    """Computes DiceLoss().forward(input, target) (sigmoid normalization)."""
    assert input_nc.shape == target_nc.shape
    N, C = input_nc.shape[0], input_nc.shape[1]
    NC = N * C

    # Free, contiguous reshape (no transpose / pad / dtype copy in HBM).
    x = input_nc.reshape(NC, -1)
    t = target_nc.reshape(NC, -1)
    HW = x.shape[-1]

    # --- row (sublane) tile --------------------------------------------------
    min_isize = min(x.dtype.itemsize, t.dtype.itemsize)
    row_pack = 8 * max(1, 4 // max(1, min_isize))   # 8 f32 / 16 bf16 / 32 i8
    if NC <= 64:
        t_r = NC                    # full-extent rows: always a legal block
    else:
        t_r = row_pack              # ragged last row tile is harmless (per-row sums)
    n_row_tiles = pl.cdiv(NC, t_r)

    # --- generation-aware VMEM budget for the input double-buffers ------------
    if vmem_budget_bytes is None:
        try:
            vmem_cap = pltpu.get_tpu_info().vmem_capacity_bytes
            vmem_budget_bytes = min(max(vmem_cap * 3 // 8, 16 << 20), 48 << 20)
        except Exception:
            vmem_budget_bytes = 24 << 20

    # --- lane (HW) tile --------------------------------------------------------
    # 2 inputs x 2 pipeline buffers of (t_r, t_hw).
    per_lane_bytes = 2 * t_r * (x.dtype.itemsize + t.dtype.itemsize)
    cap = max(128, (vmem_budget_bytes // per_lane_bytes) // 128 * 128)
    t_hw = min(int(target_lanes), cap)
    if HW <= t_hw:
        t_hw = HW                   # single full-extent tile (always legal)
    T = pl.cdiv(HW, t_hw)           # total HW tiles
    n_full = HW // t_hw             # fully-valid tiles
    has_tail = (HW % t_hw) != 0

    # --- split HW tiles across a leading parallel axis (v7x megacore) ---------
    n_splits = 2 if T >= 2 else 1
    tiles_per_split = pl.cdiv(T, n_splits)
    overshoot = (tiles_per_split * n_splits) != T
    gate_full = has_tail or overshoot

    # --- small lane-folded accumulator width -----------------------------------
    chunk_cap = max(128, (8192 // max(1, t_r)) // 128 * 128)
    chunk = t_hw
    for c in (1024, 512, 256, 128):
        if c <= chunk_cap and t_hw % c == 0:
            chunk = c
            break

    if overshoot:
        def hw_block(s, k):
            return jnp.minimum(s * tiles_per_split + k, T - 1)
    else:
        def hw_block(s, k):
            return s * tiles_per_split + k

    kernel = _make_dice_partial_kernel(
        hw=HW, t_hw=t_hw, chunk=chunk, n_full=n_full, has_tail=has_tail,
        tiles_per_split=tiles_per_split, gate_full=gate_full)

    in_bytes = per_lane_bytes * t_hw
    vmem_limit = int(min(max(in_bytes + (16 << 20), 32 << 20), 100 << 20))

    inter, denom = pl.pallas_call(
        kernel,
        out_shape=(
            jax.ShapeDtypeStruct((n_splits, NC, 1), jnp.float32),
            jax.ShapeDtypeStruct((n_splits, NC, 1), jnp.float32),
        ),
        grid_spec=pltpu.PrefetchScalarGridSpec(
            num_scalar_prefetch=0,
            grid=(n_splits, n_row_tiles, tiles_per_split),
            in_specs=[
                pl.BlockSpec((t_r, t_hw), lambda s, r, k: (r, hw_block(s, k))),
                pl.BlockSpec((t_r, t_hw), lambda s, r, k: (r, hw_block(s, k))),
            ],
            out_specs=(
                pl.BlockSpec((1, t_r, 1), lambda s, r, k: (s, r, 0)),
                pl.BlockSpec((1, t_r, 1), lambda s, r, k: (s, r, 0)),
            ),
            scratch_shapes=[
                pltpu.VMEM((t_r, chunk), jnp.float32),   # intersect accumulator
                pltpu.VMEM((t_r, chunk), jnp.float32),   # denominator accumulator
            ],
        ),
        compiler_params=pltpu.CompilerParams(
            dimension_semantics=("parallel", "parallel", "arbitrary"),
            vmem_limit_bytes=vmem_limit,
        ),
    )(x, t)

    # Tiny epilogue (n_splits*N*C*2 elements): combine partials, clamp, dice, mean.
    intersect = jnp.sum(inter[..., 0], axis=0).reshape(N, C).sum(axis=0)   # (C,)
    denom_sum = jnp.sum(denom[..., 0], axis=0).reshape(N, C).sum(axis=0)   # (C,)
    denominator = jnp.maximum(denom_sum, epsilon)
    dice = 2.0 * intersect / denominator
    return jnp.mean(1.0 - dice)


def dice_loss_ref(input_nc, target_nc, epsilon=1e-05):
    """Pure-JAX reference replicating the PyTorch forward."""
    p = jax.nn.sigmoid(input_nc.astype(jnp.float32))
    t = target_nc.astype(jnp.float32)
    axes = (0,) + tuple(range(2, input_nc.ndim))
    intersect = jnp.sum(p * t, axis=axes)
    denominator = jnp.maximum(jnp.sum(p + t, axis=axes), epsilon)
    dice = 2.0 * intersect / denominator
    return jnp.mean(1.0 - dice)


if __name__ == "__main__":
    # Small shapes consistent with the module: NCHW = (2, 4, 16, 16)
    key = jax.random.PRNGKey(0)
    kx, kt = jax.random.split(key)
    x = jax.random.normal(kx, (2, 4, 16, 16), dtype=jnp.float32)
    # Binary-ish target (like a segmentation mask)
    t = (jax.random.uniform(kt, (2, 4, 16, 16)) > 0.5).astype(jnp.float32)

    loss = dice_loss(x, t)
    jax.block_until_ready(loss)

    ref = dice_loss_ref(x, t)
    assert jnp.allclose(loss, ref, atol=1e-5, rtol=1e-5), (loss, ref)
    print("KERNEL_OK")
</pallas_src>

<mosaic_0001>
module attributes {stable_mosaic.version = 11 : i64} {
  func.func @kernel(%arg0: i32, %arg1: i32, %arg2: i32, %arg3: memref<8x256xf32, #tpu.memory_space<vmem>>, %arg4: memref<8x256xf32, #tpu.memory_space<vmem>>, %arg5: memref<1x8x1xf32, #tpu.memory_space<vmem>>, %arg6: memref<1x8x1xf32, #tpu.memory_space<vmem>>, %arg7: memref<8x256xf32, #tpu.memory_space<vmem>>, %arg8: memref<8x256xf32, #tpu.memory_space<vmem>>) attributes {dimension_semantics = [#tpu.dimension_semantics<parallel>, #tpu.dimension_semantics<parallel>, #tpu.dimension_semantics<arbitrary>], iteration_bounds = array<i64: 1, 1, 1>, scalar_prefetch = 0 : i64, scratch_operands = 2 : i64, tpu.core_type = #tpu.core_type<tc>, window_params = [{transform_indices = @transform_0, window_bounds = array<i64: 8, 256>}, {transform_indices = @transform_1, window_bounds = array<i64: 8, 256>}, {transform_indices = @transform_2, window_bounds = array<i64: 1, 8, 1>}, {transform_indices = @transform_3, window_bounds = array<i64: 1, 8, 1>}]} {
    %c0_i32 = arith.constant 0 : i32
    %0 = arith.cmpi eq, %arg2, %c0_i32 : i32
    %1 = arith.extui %0 : i1 to i32
    %c0_i32_0 = arith.constant 0 : i32
    %2 = arith.cmpi ne, %1, %c0_i32_0 : i32
    scf.if %2 {
      %cst_16 = arith.constant 0.000000e+00 : f32
      %23 = vector.broadcast %cst_16 : f32 to vector<8x256xf32>
      %c0_17 = arith.constant 0 : index
      %c0_18 = arith.constant 0 : index
      %24 = vector.load %arg7[%c0_17, %c0_18] : memref<8x256xf32, #tpu.memory_space<vmem>>, vector<8x256xf32>
      tpu.vector_store %arg7[%c0_17, %c0_18], %23 {strides = array<i32>} : memref<8x256xf32, #tpu.memory_space<vmem>>, vector<8x256xf32>,
      %cst_19 = arith.constant 0.000000e+00 : f32
      %25 = vector.broadcast %cst_19 : f32 to vector<8x256xf32>
      %c0_20 = arith.constant 0 : index
      %c0_21 = arith.constant 0 : index
      %26 = vector.load %arg8[%c0_20, %c0_21] : memref<8x256xf32, #tpu.memory_space<vmem>>, vector<8x256xf32>
      tpu.vector_store %arg8[%c0_20, %c0_21], %25 {strides = array<i32>} : memref<8x256xf32, #tpu.memory_space<vmem>>, vector<8x256xf32>,
    } else {
    }
    %c0 = arith.constant 0 : index
    %c0_1 = arith.constant 0 : index
    %3 = vector.load %arg3[%c0, %c0_1] : memref<8x256xf32, #tpu.memory_space<vmem>>, vector<8x256xf32>
    %c0_2 = arith.constant 0 : index
    %c0_3 = arith.constant 0 : index
    %4 = vector.load %arg4[%c0_2, %c0_3] : memref<8x256xf32, #tpu.memory_space<vmem>>, vector<8x256xf32>
    %cst = arith.constant 5.000000e-01 : f32
    %5 = vector.broadcast %cst : f32 to vector<8x256xf32>
    %6 = arith.mulf %5, %3 : vector<8x256xf32>
    %7 = math.tanh %6 : vector<8x256xf32>
    %cst_4 = arith.constant 5.000000e-01 : f32
    %8 = vector.broadcast %cst_4 : f32 to vector<8x256xf32>
    %9 = arith.mulf %8, %7 : vector<8x256xf32>
    %cst_5 = arith.constant 5.000000e-01 : f32
    %10 = vector.broadcast %cst_5 : f32 to vector<8x256xf32>
    %11 = arith.addf %9, %10 : vector<8x256xf32>
    %12 = arith.mulf %11, %4 : vector<8x256xf32>
    %13 = arith.addf %11, %4 : vector<8x256xf32>
    %c0_6 = arith.constant 0 : index
    %c0_7 = arith.constant 0 : index
    %14 = vector.load %arg7[%c0_6, %c0_7] : memref<8x256xf32, #tpu.memory_space<vmem>>, vector<8x256xf32>
    %15 = arith.addf %14, %12 : vector<8x256xf32>
    %c0_8 = arith.constant 0 : index
    %c0_9 = arith.constant 0 : index
    %16 = vector.load %arg7[%c0_8, %c0_9] : memref<8x256xf32, #tpu.memory_space<vmem>>, vector<8x256xf32>
    tpu.vector_store %arg7[%c0_8, %c0_9], %15 {strides = array<i32>} : memref<8x256xf32, #tpu.memory_space<vmem>>, vector<8x256xf32>,
    %c0_10 = arith.constant 0 : index
    %c0_11 = arith.constant 0 : index
    %17 = vector.load %arg8[%c0_10, %c0_11] : memref<8x256xf32, #tpu.memory_space<vmem>>, vector<8x256xf32>
    %18 = arith.addf %17, %13 : vector<8x256xf32>
    %c0_12 = arith.constant 0 : index
    %c0_13 = arith.constant 0 : index
    %19 = vector.load %arg8[%c0_12, %c0_13] : memref<8x256xf32, #tpu.memory_space<vmem>>, vector<8x256xf32>
    tpu.vector_store %arg8[%c0_12, %c0_13], %18 {strides = array<i32>} : memref<8x256xf32, #tpu.memory_space<vmem>>, vector<8x256xf32>,
    %c0_i32_14 = arith.constant 0 : i32
    %20 = arith.cmpi eq, %arg2, %c0_i32_14 : i32
    %21 = arith.extui %20 : i1 to i32
    %c0_i32_15 = arith.constant 0 : i32
    %22 = arith.cmpi ne, %21, %c0_i32_15 : i32
    scf.if %22 {
      %c0_16 = arith.constant 0 : index
      %c0_17 = arith.constant 0 : index
      %23 = vector.load %arg7[%c0_16, %c0_17] : memref<8x256xf32, #tpu.memory_space<vmem>>, vector<8x256xf32>
      %cst_18 = arith.constant dense<0.000000e+00> : vector<8xf32>
      %24 = vector.multi_reduction <add>, %23, %cst_18 [1] : vector<8x256xf32> to vector<8xf32>
      %25 = vector.shape_cast %24 : vector<8xf32> to vector<8x1xf32>
      %26 = vector.shape_cast %25 : vector<8x1xf32> to vector<1x8x1xf32>
      %c0_19 = arith.constant 0 : index
      %c0_20 = arith.constant 0 : index
      %c0_21 = arith.constant 0 : index
      %27 = vector.load %arg5[%c0_19, %c0_20, %c0_21] : memref<1x8x1xf32, #tpu.memory_space<vmem>>, vector<1x8x1xf32>
      tpu.vector_store %arg5[%c0_19, %c0_20, %c0_21], %26 {strides = array<i32>} : memref<1x8x1xf32, #tpu.memory_space<vmem>>, vector<1x8x1xf32>,
      %c0_22 = arith.constant 0 : index
      %c0_23 = arith.constant 0 : index
      %28 = vector.load %arg8[%c0_22, %c0_23] : memref<8x256xf32, #tpu.memory_space<vmem>>, vector<8x256xf32>
      %cst_24 = arith.constant dense<0.000000e+00> : vector<8xf32>
      %29 = vector.multi_reduction <add>, %28, %cst_24 [1] : vector<8x256xf32> to vector<8xf32>
      %30 = vector.shape_cast %29 : vector<8xf32> to vector<8x1xf32>
      %31 = vector.shape_cast %30 : vector<8x1xf32> to vector<1x8x1xf32>
      %c0_25 = arith.constant 0 : index
      %c0_26 = arith.constant 0 : index
      %c0_27 = arith.constant 0 : index
      %32 = vector.load %arg6[%c0_25, %c0_26, %c0_27] : memref<1x8x1xf32, #tpu.memory_space<vmem>>, vector<1x8x1xf32>
      tpu.vector_store %arg6[%c0_25, %c0_26, %c0_27], %31 {strides = array<i32>} : memref<1x8x1xf32, #tpu.memory_space<vmem>>, vector<1x8x1xf32>,
    } else {
    }
    return
  }
  func.func @transform_0(%arg0: i32, %arg1: i32, %arg2: i32) -> (i32, i32) {
    %c1_i32 = arith.constant 1 : i32
    %0 = arith.muli %arg0, %c1_i32 : i32
    %1 = arith.addi %0, %arg2 : i32
    %c0_i32 = arith.constant 0 : i32
    return %arg1, %1 : i32, i32
  }
  func.func @transform_1(%arg0: i32, %arg1: i32, %arg2: i32) -> (i32, i32) {
    %c1_i32 = arith.constant 1 : i32
    %0 = arith.muli %arg0, %c1_i32 : i32
    %1 = arith.addi %0, %arg2 : i32
    %c0_i32 = arith.constant 0 : i32
    return %arg1, %1 : i32, i32
  }
  func.func @transform_2(%arg0: i32, %arg1: i32, %arg2: i32) -> (i32, i32, i32) {
    %c0_i32 = arith.constant 0 : i32
    %c0_i32_0 = arith.constant 0 : i32
    return %arg0, %arg1, %c0_i32 : i32, i32, i32
  }
  func.func @transform_3(%arg0: i32, %arg1: i32, %arg2: i32) -> (i32, i32, i32) {
    %c0_i32 = arith.constant 0 : i32
    %c0_i32_0 = arith.constant 0 : i32
    return %arg0, %arg1, %c0_i32 : i32, i32, i32
  }
}

</mosaic_0001>

<llo_original>
// kernel: tpu_custom_call.1
$region0: #{tpu_custom_call.1}
  #allocation0 [shape = 'u32[]', space=smem, size = 0x4, offset = 0x4, fixed_abs, tag = 'smem constant byte address 0x4 - core index']
  #allocation1 [shape = 'u32[144,128]{1,0:T(1,128)}', space=vmem, size = 0x12000, scoped, tag = 'internal scratch']
  #allocation2 [shape = 'f32[8,256]{1,0:T(8,128)}', space=vmem, size = 0x2000, scoped, tag = 'scratch operand']
  #allocation3 [shape = 'f32[8,256]{1,0:T(8,128)}', space=vmem, size = 0x2000, scoped, tag = 'scratch operand']
  %s0 = inlined_call_operand.hbm [shape: f32[8,256], index: 0, kind: input, shape index: {}]
  %s1 = inlined_call_operand.hbm [shape: f32[8,256], index: 1, kind: input, shape index: {}]
  %s2 = inlined_call_operand.vmem [shape: f32[1,8,1], index: 2, kind: output, shape index: {0}]
  %s3 = inlined_call_operand.vmem [shape: f32[1,8,1], index: 3, kind: output, shape index: {1}]
  %4 = xla_tuple %s2, %s3
  %s5 = sld [smem:[#allocation0]]
  $region42: #{tpu_custom_call.1} parent=0
    _
  %s7 = ssub.s32 1, %s5
  %s8 = scalar_select 0, %s7, %s5
  $region1: #{tpu_custom_call.1} parent=0
    #allocation4 [shape = 'u8[8192]{0}', space=vmem, size = 0x2000, scoped, tag = 'input window, operand 0, single buffered']
    #allocation5 [shape = 's32[1]{0}', space=sflag, size = 0x4, scoped, tag = 'scoped memory for tpu_custom_call.1']
    #allocation6 [shape = 'u8[8192]{0}', space=vmem, size = 0x2000, scoped, tag = 'input window, operand 1, single buffered']
    #allocation7 [shape = 's32[1]{0}', space=sflag, size = 0x4, scoped, tag = 'scoped memory for tpu_custom_call.1']
    %9 = vsyncpa [#allocation5], 0
    %10 = vsyncpa [#allocation7], 0
    // Predicated region
    $region2: #{tpu_custom_call.1} parent=1 // pred_check
      _
    $region3: #{tpu_custom_call.1} parent=1 // pred_check_branch
      %12 = sbr.rel (0) target = $region5
    $region4: #{tpu_custom_call.1} parent=1 // pred_region
      %s13 = sadd.s32 0, 0
      %s14 = smul.u32 2, %s13
      %s16 = ssub.s32 256, 256
      %17 = vsyncadd [#allocation5], %s16
      %s18 = smul.addr %s14, 128
      %s19 = scalar_lea.hbm %s0, %s18
      %s21 = sshll.u32 [#allocation4], 4
      %s22 = int_to_ptr.vmem [resolvable:$true] %s21
      %24 = dma.hbm_to_vmem [thread:$0]  %s19, 256, %s22, [#allocation5]
    $region5: #{tpu_custom_call.1} parent=1 // pred_fallthru
      _
    // Predicated region
    $region6: #{tpu_custom_call.1} parent=1 // pred_check
      _
    $region7: #{tpu_custom_call.1} parent=1 // pred_check_branch
      %26 = sbr.rel (0) target = $region9
    $region8: #{tpu_custom_call.1} parent=1 // pred_region
      %s27 = sadd.s32 0, 0
      %s28 = smul.u32 2, %s27
      %s30 = ssub.s32 256, 256
      %31 = vsyncadd [#allocation7], %s30
      %s32 = smul.addr %s28, 128
      %s33 = scalar_lea.hbm %s1, %s32
      %s35 = sshll.u32 [#allocation6], 4
      %s36 = int_to_ptr.vmem [resolvable:$true] %s35
      %38 = dma.hbm_to_vmem [thread:$0]  %s33, 256, %s36, [#allocation7]
    $region9: #{tpu_custom_call.1} parent=1 // pred_fallthru
      _
    // Predicated region
    $region10: #{tpu_custom_call.1} parent=1 // pred_check
      _
    $region11: #{tpu_custom_call.1} parent=1 // pred_check_branch
      %40 = sbr.rel (0) target = $region13
    $region12: #{tpu_custom_call.1} parent=1 // pred_region
      %41 = dma.done [#allocation5], 256
    $region13: #{tpu_custom_call.1} parent=1 // pred_fallthru
      _
    // Predicated region
    $region14: #{tpu_custom_call.1} parent=1 // pred_check
      _
    $region15: #{tpu_custom_call.1} parent=1 // pred_check_branch
      %43 = sbr.rel (0) target = $region17
    $region16: #{tpu_custom_call.1} parent=1 // pred_region
      %44 = dma.done [#allocation7], 256
    $region17: #{tpu_custom_call.1} parent=1 // pred_fallthru
      _
    %s45 = sadd.s32 0, 0
    %s46 = smul.u32 2, %s45
    %s47 = sadd.s32 0, 0
    %s48 = smul.u32 2, %s47
    %p49 = scmp.eq.s32.totalorder 0, 0
    // Predicated region
    $region18: #{tpu_custom_call.1} parent=1 // pred_check
      %p50 = pneg %p49
    $region19: #{tpu_custom_call.1} parent=1 // pred_check_branch
      %52 = sbr.rel (%p50) target = $region21
    $region20: #{tpu_custom_call.1} parent=1 // pred_region
      %53 = vst [vmem:[#allocation2] sm:$0xff] 0.0
      %54 = vst [vmem:[#allocation2 + $0x8] sm:$0xff] 0.0
      %55 = vst [vmem:[#allocation3] sm:$0xff] 0.0
      %56 = vst [vmem:[#allocation3 + $0x8] sm:$0xff] 0.0
    $region21: #{tpu_custom_call.1} parent=1 // pred_fallthru
      _
    %v57 = vld [vmem:[#allocation4] sm:$0xff]
    %v58 = vld [vmem:[#allocation4 + $0x8] sm:$0xff]
    %v59 = vld [vmem:[#allocation6] sm:$0xff]
    %v60 = vld [vmem:[#allocation6 + $0x8] sm:$0xff]
    %v61 = vmul.f32 %v57, 0.5
    %v62 = vmul.f32 %v58, 0.5
    %v63 = vtanh.pop %v61
    %v64 = vtanh.pop %v62
    %v65 = vmul.f32 %v63, 0.5
    %v66 = vmul.f32 %v64, 0.5
    %v67 = vadd.f32 %v65, 0.5
    %v68 = vadd.f32 %v66, 0.5
    %v69 = vmul.f32 %v67, %v59
    %v70 = vmul.f32 %v68, %v60
    %v71 = vadd.f32 %v67, %v59
    %v72 = vadd.f32 %v68, %v60
    %v73 = vld [vmem:[#allocation2] sm:$0xff]
    %v74 = vld [vmem:[#allocation2 + $0x8] sm:$0xff]
    %v75 = vadd.f32 %v73, %v69
    %v76 = vadd.f32 %v74, %v70
    %77 = vst [vmem:[#allocation2] sm:$0xff] %v75
    %78 = vst [vmem:[#allocation2 + $0x8] sm:$0xff] %v76
    %v79 = vld [vmem:[#allocation3] sm:$0xff]
    %v80 = vld [vmem:[#allocation3 + $0x8] sm:$0xff]
    %v81 = vadd.f32 %v79, %v71
    %v82 = vadd.f32 %v80, %v72
    %83 = vst [vmem:[#allocation3] sm:$0xff] %v81
    %84 = vst [vmem:[#allocation3 + $0x8] sm:$0xff] %v82
    // Predicated region
    $region22: #{tpu_custom_call.1} parent=1 // pred_check
      %p85 = pneg %p49
    $region23: #{tpu_custom_call.1} parent=1 // pred_check_branch
      %87 = sbr.rel (%p85) target = $region25
    $region24: #{tpu_custom_call.1} parent=1 // pred_region
      %v88 = vld [vmem:[#allocation2] sm:$0xff]
      %v89 = vld [vmem:[#allocation2 + $0x8] sm:$0xff]
      %v90 = vadd.f32 %v88, %v89
      %91 = vadd.xlane.f32.xlu0 %v90
      %v92 = vpop.xlane.xlu0 %91
      %vm93 = vcmask 7168
      %94 = vst.msk [vmem:[%s2] sm:$0xff] %vm93, %v92
      %v95 = vld [vmem:[#allocation3] sm:$0xff]
      %v96 = vld [vmem:[#allocation3 + $0x8] sm:$0xff]
      %v97 = vadd.f32 %v95, %v96
      %98 = vadd.xlane.f32.xlu0 %v97
      %v99 = vpop.xlane.xlu0 %98
      %100 = vst.msk [vmem:[%s3] sm:$0xff] %vm93, %v99
    $region25: #{tpu_custom_call.1} parent=1 // pred_fallthru
      _
    // Predicated region
    $region26: #{tpu_custom_call.1} parent=1 // pred_check
      _
    $region27: #{tpu_custom_call.1} parent=1 // pred_check_branch
      %102 = sbr.rel (0) target = $region29
    $region28: #{tpu_custom_call.1} parent=1 // pred_region
      _
    $region29: #{tpu_custom_call.1} parent=1 // pred_fallthru
      _
    // Predicated region
    $region30: #{tpu_custom_call.1} parent=1 // pred_check
      _
    $region31: #{tpu_custom_call.1} parent=1 // pred_check_branch
      %104 = sbr.rel (0) target = $region33
    $region32: #{tpu_custom_call.1} parent=1 // pred_region
      _
    $region33: #{tpu_custom_call.1} parent=1 // pred_fallthru
      _
    // Predicated region
    $region34: #{tpu_custom_call.1} parent=1 // pred_check
      _
    $region35: #{tpu_custom_call.1} parent=1 // pred_check_branch
      %106 = sbr.rel (0) target = $region37
    $region36: #{tpu_custom_call.1} parent=1 // pred_region
      _
    $region37: #{tpu_custom_call.1} parent=1 // pred_fallthru
      _
    // Predicated region
    $region38: #{tpu_custom_call.1} parent=1 // pred_check
      _
    $region39: #{tpu_custom_call.1} parent=1 // pred_check_branch
      %108 = sbr.rel (0) target = $region41
    $region40: #{tpu_custom_call.1} parent=1 // pred_region
      _
    $region41: #{tpu_custom_call.1} parent=1 // pred_fallthru
      _
    %109 = vsyncpa [#allocation5], 1
    %110 = vsyncpa [#allocation7], 1

</llo_original>
